<compile_context>
chip_gen: v5e
topology: v5e:2x2
jax: 0.10.0
libtpu: 0.0.40
codegen_flags: <defaults>
</compile_context>

<pallas_src>
import functools

import jax
import jax.numpy as jnp
from jax.experimental import pallas as pl
from jax.experimental.pallas import tpu as pltpu

LANE = 128  # lane width; weights are zero-padded to this so every VPU op,
            # MXU operand and output store is lane-dense (unmasked).


def init_params(key, input_features, output_features, hidden_size):
    """Matches nn.RNN / nn.Linear default init layout of the PyTorch module."""
    features = input_features + output_features
    bound = 1.0 / jnp.sqrt(hidden_size)
    k = jax.random.split(key, 6)
    u = lambda kk, shape: jax.random.uniform(kk, shape, jnp.float32, -bound, bound)
    return {
        "w_ih": u(k[0], (hidden_size, features)),        # rnn.weight_ih_l0
        "w_hh": u(k[1], (hidden_size, hidden_size)),     # rnn.weight_hh_l0
        "b_ih": u(k[2], (hidden_size,)),                 # rnn.bias_ih_l0
        "b_hh": u(k[3], (hidden_size,)),                 # rnn.bias_hh_l0
        "w_out": u(k[4], (2 * features, hidden_size)),   # output_layer.weight
        "b_out": u(k[5], (2 * features,)),               # output_layer.bias
    }


def pack_params(params, lane=LANE):
    """One-time weight prep (do NOT call per forward step).

    Packs all weights/biases -- pre-transposed, bias pre-summed, zero-padded
    to 128 lanes -- into ONE f32 slab so the kernel takes a single parameter
    DMA and the per-call wrapper has zero weight-layout ops.

    Slab layout, shape (2*lane + 8, lane):
      rows [0        : lane    )  : W_hh^T  (zero padded)
      rows [lane     : 2*lane  )  : W_out^T (zero padded)
      row   2*lane + 0            : W_ih[:, 0]   (weight of s)
      row   2*lane + 1            : W_ih[:, 1]   (weight of shifted x)
      row   2*lane + 2            : b_ih + b_hh
      row   2*lane + 3            : b_out
      rows  2*lane+4 .. 2*lane+7  : zero (sublane padding)
    """
    H = params["w_hh"].shape[0]
    O = params["w_out"].shape[0]
    F = params["w_ih"].shape[1]
    if H > lane or O > lane:
        raise NotImplementedError("hidden_size and 2*features must be <= 128")
    if F != 2:
        raise NotImplementedError("kernel is specialised to features == 2 ([s, x])")
    slab = jnp.zeros((2 * lane + 8, lane), jnp.float32)
    slab = slab.at[:H, :H].set(params["w_hh"].T.astype(jnp.float32))
    slab = slab.at[lane:lane + H, :O].set(params["w_out"].T.astype(jnp.float32))
    slab = slab.at[2 * lane + 0, :H].set(params["w_ih"][:, 0].astype(jnp.float32))
    slab = slab.at[2 * lane + 1, :H].set(params["w_ih"][:, 1].astype(jnp.float32))
    slab = slab.at[2 * lane + 2, :H].set(
        (params["b_ih"] + params["b_hh"]).astype(jnp.float32))
    slab = slab.at[2 * lane + 3, :O].set(params["b_out"].astype(jnp.float32))
    return slab


def _rnn_kernel(s_ref, x_ref, w_ref, out_ref, *, seq_len, lane):
    """Single-layer tanh RNN + output projection, fully resident in VMEM.

    s_ref  : (B, T)              conditioning series (unshifted)
    x_ref  : (B, T)              target series; roll-by-1 + zero-first-step is
                                 implicit static indexing in the unrolled loop
    w_ref  : (2*lane + 8, lane)  packed weight slab (see pack_params)
    out_ref: (T, B, lane)        time-major, lane-dense output slab;
                                 lane 0 = mean, lane 1 = log_var
    """
    whh   = w_ref[0:lane, :]                       # (lane, lane)  W_hh^T (padded)
    wout  = w_ref[lane:2 * lane, :]                # (lane, lane)  W_out^T (padded)
    w_s   = w_ref[2 * lane + 0:2 * lane + 1, :]    # (1, lane)
    w_x   = w_ref[2 * lane + 1:2 * lane + 2, :]    # (1, lane)
    b     = w_ref[2 * lane + 2:2 * lane + 3, :]    # (1, lane)  b_ih + b_hh
    b_out = w_ref[2 * lane + 3:2 * lane + 4, :]    # (1, lane)

    s_all = s_ref[...]                             # (B, T)  single load each
    x_all = x_ref[...]                             # (B, T)

    # Zero padding in the slab keeps padded hidden lanes exactly 0 through the
    # whole recurrence (tanh(0) == 0), so no masking is ever needed.
    h = None
    # Static Python unroll: T is small and unrolling lets the scheduler run
    # the (VPU-only) input contributions and the per-step output projections
    # off the serial tanh/MXU recurrence chain.
    for t in range(seq_len):
        # Input contribution: s_t * W_ih[:,0] + x_{t-1} * W_ih[:,1] + b.
        # F == 2 -> two lane-broadcast multiplies; no K=2 MXU matmul and no
        # host-side roll/concat/pad/transpose.
        inp = s_all[:, t:t + 1] * w_s + b
        if t > 0:
            inp = inp + x_all[:, t - 1:t] * w_x
        if h is None:                              # h_{-1} == 0: skip the dot
            h = jnp.tanh(inp)
        else:
            h = jnp.tanh(inp + jnp.dot(h, whh,
                                       preferred_element_type=jnp.float32))
        # Output projection for this step: independent of later steps, hidden
        # state never round-trips through VMEM, store is 128-lane dense.
        out_ref[t] = jnp.dot(h, wout, preferred_element_type=jnp.float32) + b_out


@jax.jit
def conditional_gaussian_rnn_forward(s, x, w_packed):
    """s, x: (B, T) float32; w_packed: pack_params(params).
    Returns (mean, log_var), each (B, T)."""
    B, T = s.shape
    lane = w_packed.shape[1]

    kernel = functools.partial(_rnn_kernel, seq_len=T, lane=lane)
    out = pl.pallas_call(
        kernel,
        out_shape=jax.ShapeDtypeStruct((T, B, lane), jnp.float32),
        in_specs=[pl.BlockSpec(memory_space=pltpu.MemorySpace.VMEM)] * 3,
        out_specs=pl.BlockSpec(memory_space=pltpu.MemorySpace.VMEM),
        cost_estimate=pl.CostEstimate(
            flops=4 * T * B * lane * lane,
            transcendentals=T * B * lane,
            bytes_accessed=4 * (s.size + x.size + w_packed.size + T * B * lane),
        ),
    )(s.astype(jnp.float32), x.astype(jnp.float32), w_packed)

    mean = out[:, :, 0].T                          # (B, T)
    log_var = out[:, :, 1].T                       # (B, T)
    return mean, log_var


def _reference_forward(s, x, params):
    """Pure-JAX reference (lax.scan, full f32 precision) for the self-check."""
    hi = jax.lax.Precision.HIGHEST
    x_shift = jnp.roll(x, 1, axis=1).at[:, 0].set(0.0)
    inp = jnp.stack([s, x_shift], axis=-1)         # (B, T, F)
    inp_tbf = jnp.transpose(inp, (1, 0, 2))        # (T, B, F)
    H = params["w_hh"].shape[0]
    B = s.shape[0]

    def step(h, x_t):
        pre = (jnp.dot(x_t, params["w_ih"].T, precision=hi) + params["b_ih"]
               + jnp.dot(h, params["w_hh"].T, precision=hi) + params["b_hh"])
        h_new = jnp.tanh(pre)
        return h_new, h_new

    _, hs = jax.lax.scan(step, jnp.zeros((B, H), jnp.float32), inp_tbf)
    out = jnp.dot(hs, params["w_out"].T, precision=hi) + params["b_out"]
    out = jnp.transpose(out, (1, 0, 2))            # (B, T, O)
    return out[..., 0], out[..., 1]


if __name__ == "__main__":
    input_features = 1
    output_features = 1
    hidden_size = 32
    batch = 2
    seq = 8

    key = jax.random.PRNGKey(0)
    k_s, k_x, k_p = jax.random.split(key, 3)
    s = jax.random.normal(k_s, (batch, seq), jnp.float32)
    x = jax.random.normal(k_x, (batch, seq), jnp.float32)
    params = init_params(k_p, input_features, output_features, hidden_size)

    # One-time weight layout prep (outside the per-call path).
    w_packed = jax.block_until_ready(pack_params(params))

    mean, log_var = conditional_gaussian_rnn_forward(s, x, w_packed)
    mean = jax.block_until_ready(mean)
    log_var = jax.block_until_ready(log_var)

    mean_ref, log_var_ref = _reference_forward(s, x, params)
    assert mean.shape == (batch, seq) and log_var.shape == (batch, seq)
    assert jnp.allclose(mean, mean_ref, atol=1e-4, rtol=1e-4), (
        float(jnp.max(jnp.abs(mean - mean_ref))))
    assert jnp.allclose(log_var, log_var_ref, atol=1e-4, rtol=1e-4), (
        float(jnp.max(jnp.abs(log_var - log_var_ref))))

    print("KERNEL_OK")
</pallas_src>

<mosaic_0001>
module attributes {stable_mosaic.version = 11 : i64} {
  func.func @_rnn_kernel(%arg0: memref<2x8xf32, #tpu.memory_space<vmem>>, %arg1: memref<2x8xf32, #tpu.memory_space<vmem>>, %arg2: memref<264x128xf32, #tpu.memory_space<vmem>>, %arg3: memref<8x2x128xf32, #tpu.memory_space<vmem>>) attributes {dimension_semantics = [], scalar_prefetch = 0 : i64, scratch_operands = 0 : i64, tpu.core_type = #tpu.core_type<tc>} {
    %c0 = arith.constant 0 : index
    %c0_0 = arith.constant 0 : index
    %0 = vector.load %arg2[%c0, %c0_0] : memref<264x128xf32, #tpu.memory_space<vmem>>, vector<128x128xf32>
    %c128 = arith.constant 128 : index
    %c0_1 = arith.constant 0 : index
    %1 = vector.load %arg2[%c128, %c0_1] : memref<264x128xf32, #tpu.memory_space<vmem>>, vector<128x128xf32>
    %c256 = arith.constant 256 : index
    %c0_2 = arith.constant 0 : index
    %2 = vector.load %arg2[%c256, %c0_2] : memref<264x128xf32, #tpu.memory_space<vmem>>, vector<1x128xf32>
    %c257 = arith.constant 257 : index
    %c0_3 = arith.constant 0 : index
    %3 = vector.load %arg2[%c257, %c0_3] : memref<264x128xf32, #tpu.memory_space<vmem>>, vector<1x128xf32>
    %c258 = arith.constant 258 : index
    %c0_4 = arith.constant 0 : index
    %4 = vector.load %arg2[%c258, %c0_4] : memref<264x128xf32, #tpu.memory_space<vmem>>, vector<1x128xf32>
    %c259 = arith.constant 259 : index
    %c0_5 = arith.constant 0 : index
    %5 = vector.load %arg2[%c259, %c0_5] : memref<264x128xf32, #tpu.memory_space<vmem>>, vector<1x128xf32>
    %c0_6 = arith.constant 0 : index
    %c0_7 = arith.constant 0 : index
    %6 = vector.load %arg0[%c0_6, %c0_7] : memref<2x8xf32, #tpu.memory_space<vmem>>, vector<2x8xf32>
    %c0_8 = arith.constant 0 : index
    %c0_9 = arith.constant 0 : index
    %7 = vector.load %arg1[%c0_8, %c0_9] : memref<2x8xf32, #tpu.memory_space<vmem>>, vector<2x8xf32>
    %8 = vector.extract_strided_slice %6 {offsets = [0, 0], sizes = [2, 1], strides = [1, 1]} : vector<2x8xf32> to vector<2x1xf32>
    %9 = vector.broadcast %8 : vector<2x1xf32> to vector<2x128xf32>
    %10 = vector.broadcast %2 : vector<1x128xf32> to vector<2x128xf32>
    %11 = arith.mulf %9, %10 : vector<2x128xf32>
    %12 = vector.broadcast %4 : vector<1x128xf32> to vector<2x128xf32>
    %13 = arith.addf %11, %12 : vector<2x128xf32>
    %14 = math.tanh %13 : vector<2x128xf32>
    %cst = arith.constant dense<0.000000e+00> : vector<2x128xf32>
    %15 = tpu.matmul %14, %1, %cst {dimension_numbers = #tpu.dot_dimension_numbers<[1], [0], [0], [1], [0, 0, 1, 1], [], []>} : vector<2x128xf32>, vector<128x128xf32>, vector<2x128xf32> -> vector<2x128xf32>
    %16 = vector.broadcast %5 : vector<1x128xf32> to vector<2x128xf32>
    %17 = arith.addf %15, %16 : vector<2x128xf32>
    %c0_10 = arith.constant 0 : index
    %c0_11 = arith.constant 0 : index
    %c0_12 = arith.constant 0 : index
    %18 = vector.load %arg3[%c0_10, %c0_11, %c0_12] : memref<8x2x128xf32, #tpu.memory_space<vmem>>, vector<1x2x128xf32>
    %19 = vector.shape_cast %18 : vector<1x2x128xf32> to vector<2x128xf32>
    %20 = vector.shape_cast %17 : vector<2x128xf32> to vector<1x2x128xf32>
    tpu.vector_store %arg3[%c0_10, %c0_11, %c0_12], %20 {strides = array<i32>} : memref<8x2x128xf32, #tpu.memory_space<vmem>>, vector<1x2x128xf32>,
    %21 = vector.extract_strided_slice %6 {offsets = [0, 1], sizes = [2, 1], strides = [1, 1]} : vector<2x8xf32> to vector<2x1xf32>
    %22 = vector.broadcast %21 : vector<2x1xf32> to vector<2x128xf32>
    %23 = vector.broadcast %2 : vector<1x128xf32> to vector<2x128xf32>
    %24 = arith.mulf %22, %23 : vector<2x128xf32>
    %25 = vector.broadcast %4 : vector<1x128xf32> to vector<2x128xf32>
    %26 = arith.addf %24, %25 : vector<2x128xf32>
    %27 = vector.extract_strided_slice %7 {offsets = [0, 0], sizes = [2, 1], strides = [1, 1]} : vector<2x8xf32> to vector<2x1xf32>
    %28 = vector.broadcast %27 : vector<2x1xf32> to vector<2x128xf32>
    %29 = vector.broadcast %3 : vector<1x128xf32> to vector<2x128xf32>
    %30 = arith.mulf %28, %29 : vector<2x128xf32>
    %31 = arith.addf %26, %30 : vector<2x128xf32>
    %cst_13 = arith.constant dense<0.000000e+00> : vector<2x128xf32>
    %32 = tpu.matmul %14, %0, %cst_13 {dimension_numbers = #tpu.dot_dimension_numbers<[1], [0], [0], [1], [0, 0, 1, 1], [], []>} : vector<2x128xf32>, vector<128x128xf32>, vector<2x128xf32> -> vector<2x128xf32>
    %33 = arith.addf %31, %32 : vector<2x128xf32>
    %34 = math.tanh %33 : vector<2x128xf32>
    %cst_14 = arith.constant dense<0.000000e+00> : vector<2x128xf32>
    %35 = tpu.matmul %34, %1, %cst_14 {dimension_numbers = #tpu.dot_dimension_numbers<[1], [0], [0], [1], [0, 0, 1, 1], [], []>} : vector<2x128xf32>, vector<128x128xf32>, vector<2x128xf32> -> vector<2x128xf32>
    %36 = vector.broadcast %5 : vector<1x128xf32> to vector<2x128xf32>
    %37 = arith.addf %35, %36 : vector<2x128xf32>
    %c1 = arith.constant 1 : index
    %c0_15 = arith.constant 0 : index
    %c0_16 = arith.constant 0 : index
    %38 = vector.load %arg3[%c1, %c0_15, %c0_16] : memref<8x2x128xf32, #tpu.memory_space<vmem>>, vector<1x2x128xf32>
    %39 = vector.shape_cast %38 : vector<1x2x128xf32> to vector<2x128xf32>
    %40 = vector.shape_cast %37 : vector<2x128xf32> to vector<1x2x128xf32>
    tpu.vector_store %arg3[%c1, %c0_15, %c0_16], %40 {strides = array<i32>} : memref<8x2x128xf32, #tpu.memory_space<vmem>>, vector<1x2x128xf32>,
    %41 = vector.extract_strided_slice %6 {offsets = [0, 2], sizes = [2, 1], strides = [1, 1]} : vector<2x8xf32> to vector<2x1xf32>
    %42 = vector.broadcast %41 : vector<2x1xf32> to vector<2x128xf32>
    %43 = vector.broadcast %2 : vector<1x128xf32> to vector<2x128xf32>
    %44 = arith.mulf %42, %43 : vector<2x128xf32>
    %45 = vector.broadcast %4 : vector<1x128xf32> to vector<2x128xf32>
    %46 = arith.addf %44, %45 : vector<2x128xf32>
    %47 = vector.extract_strided_slice %7 {offsets = [0, 1], sizes = [2, 1], strides = [1, 1]} : vector<2x8xf32> to vector<2x1xf32>
    %48 = vector.broadcast %47 : vector<2x1xf32> to vector<2x128xf32>
    %49 = vector.broadcast %3 : vector<1x128xf32> to vector<2x128xf32>
    %50 = arith.mulf %48, %49 : vector<2x128xf32>
    %51 = arith.addf %46, %50 : vector<2x128xf32>
    %cst_17 = arith.constant dense<0.000000e+00> : vector<2x128xf32>
    %52 = tpu.matmul %34, %0, %cst_17 {dimension_numbers = #tpu.dot_dimension_numbers<[1], [0], [0], [1], [0, 0, 1, 1], [], []>} : vector<2x128xf32>, vector<128x128xf32>, vector<2x128xf32> -> vector<2x128xf32>
    %53 = arith.addf %51, %52 : vector<2x128xf32>
    %54 = math.tanh %53 : vector<2x128xf32>
    %cst_18 = arith.constant dense<0.000000e+00> : vector<2x128xf32>
    %55 = tpu.matmul %54, %1, %cst_18 {dimension_numbers = #tpu.dot_dimension_numbers<[1], [0], [0], [1], [0, 0, 1, 1], [], []>} : vector<2x128xf32>, vector<128x128xf32>, vector<2x128xf32> -> vector<2x128xf32>
    %56 = vector.broadcast %5 : vector<1x128xf32> to vector<2x128xf32>
    %57 = arith.addf %55, %56 : vector<2x128xf32>
    %c2 = arith.constant 2 : index
    %c0_19 = arith.constant 0 : index
    %c0_20 = arith.constant 0 : index
    %58 = vector.load %arg3[%c2, %c0_19, %c0_20] : memref<8x2x128xf32, #tpu.memory_space<vmem>>, vector<1x2x128xf32>
    %59 = vector.shape_cast %58 : vector<1x2x128xf32> to vector<2x128xf32>
    %60 = vector.shape_cast %57 : vector<2x128xf32> to vector<1x2x128xf32>
    tpu.vector_store %arg3[%c2, %c0_19, %c0_20], %60 {strides = array<i32>} : memref<8x2x128xf32, #tpu.memory_space<vmem>>, vector<1x2x128xf32>,
    %61 = vector.extract_strided_slice %6 {offsets = [0, 3], sizes = [2, 1], strides = [1, 1]} : vector<2x8xf32> to vector<2x1xf32>
    %62 = vector.broadcast %61 : vector<2x1xf32> to vector<2x128xf32>
    %63 = vector.broadcast %2 : vector<1x128xf32> to vector<2x128xf32>
    %64 = arith.mulf %62, %63 : vector<2x128xf32>
    %65 = vector.broadcast %4 : vector<1x128xf32> to vector<2x128xf32>
    %66 = arith.addf %64, %65 : vector<2x128xf32>
    %67 = vector.extract_strided_slice %7 {offsets = [0, 2], sizes = [2, 1], strides = [1, 1]} : vector<2x8xf32> to vector<2x1xf32>
    %68 = vector.broadcast %67 : vector<2x1xf32> to vector<2x128xf32>
    %69 = vector.broadcast %3 : vector<1x128xf32> to vector<2x128xf32>
    %70 = arith.mulf %68, %69 : vector<2x128xf32>
    %71 = arith.addf %66, %70 : vector<2x128xf32>
    %cst_21 = arith.constant dense<0.000000e+00> : vector<2x128xf32>
    %72 = tpu.matmul %54, %0, %cst_21 {dimension_numbers = #tpu.dot_dimension_numbers<[1], [0], [0], [1], [0, 0, 1, 1], [], []>} : vector<2x128xf32>, vector<128x128xf32>, vector<2x128xf32> -> vector<2x128xf32>
    %73 = arith.addf %71, %72 : vector<2x128xf32>
    %74 = math.tanh %73 : vector<2x128xf32>
    %cst_22 = arith.constant dense<0.000000e+00> : vector<2x128xf32>
    %75 = tpu.matmul %74, %1, %cst_22 {dimension_numbers = #tpu.dot_dimension_numbers<[1], [0], [0], [1], [0, 0, 1, 1], [], []>} : vector<2x128xf32>, vector<128x128xf32>, vector<2x128xf32> -> vector<2x128xf32>
    %76 = vector.broadcast %5 : vector<1x128xf32> to vector<2x128xf32>
    %77 = arith.addf %75, %76 : vector<2x128xf32>
    %c3 = arith.constant 3 : index
    %c0_23 = arith.constant 0 : index
    %c0_24 = arith.constant 0 : index
    %78 = vector.load %arg3[%c3, %c0_23, %c0_24] : memref<8x2x128xf32, #tpu.memory_space<vmem>>, vector<1x2x128xf32>
    %79 = vector.shape_cast %78 : vector<1x2x128xf32> to vector<2x128xf32>
    %80 = vector.shape_cast %77 : vector<2x128xf32> to vector<1x2x128xf32>
    tpu.vector_store %arg3[%c3, %c0_23, %c0_24], %80 {strides = array<i32>} : memref<8x2x128xf32, #tpu.memory_space<vmem>>, vector<1x2x128xf32>,
    %81 = vector.extract_strided_slice %6 {offsets = [0, 4], sizes = [2, 1], strides = [1, 1]} : vector<2x8xf32> to vector<2x1xf32>
    %82 = vector.broadcast %81 : vector<2x1xf32> to vector<2x128xf32>
    %83 = vector.broadcast %2 : vector<1x128xf32> to vector<2x128xf32>
    %84 = arith.mulf %82, %83 : vector<2x128xf32>
    %85 = vector.broadcast %4 : vector<1x128xf32> to vector<2x128xf32>
    %86 = arith.addf %84, %85 : vector<2x128xf32>
    %87 = vector.extract_strided_slice %7 {offsets = [0, 3], sizes = [2, 1], strides = [1, 1]} : vector<2x8xf32> to vector<2x1xf32>
    %88 = vector.broadcast %87 : vector<2x1xf32> to vector<2x128xf32>
    %89 = vector.broadcast %3 : vector<1x128xf32> to vector<2x128xf32>
    %90 = arith.mulf %88, %89 : vector<2x128xf32>
    %91 = arith.addf %86, %90 : vector<2x128xf32>
    %cst_25 = arith.constant dense<0.000000e+00> : vector<2x128xf32>
    %92 = tpu.matmul %74, %0, %cst_25 {dimension_numbers = #tpu.dot_dimension_numbers<[1], [0], [0], [1], [0, 0, 1, 1], [], []>} : vector<2x128xf32>, vector<128x128xf32>, vector<2x128xf32> -> vector<2x128xf32>
    %93 = arith.addf %91, %92 : vector<2x128xf32>
    %94 = math.tanh %93 : vector<2x128xf32>
    %cst_26 = arith.constant dense<0.000000e+00> : vector<2x128xf32>
    %95 = tpu.matmul %94, %1, %cst_26 {dimension_numbers = #tpu.dot_dimension_numbers<[1], [0], [0], [1], [0, 0, 1, 1], [], []>} : vector<2x128xf32>, vector<128x128xf32>, vector<2x128xf32> -> vector<2x128xf32>
    %96 = vector.broadcast %5 : vector<1x128xf32> to vector<2x128xf32>
    %97 = arith.addf %95, %96 : vector<2x128xf32>
    %c4 = arith.constant 4 : index
    %c0_27 = arith.constant 0 : index
    %c0_28 = arith.constant 0 : index
    %98 = vector.load %arg3[%c4, %c0_27, %c0_28] : memref<8x2x128xf32, #tpu.memory_space<vmem>>, vector<1x2x128xf32>
    %99 = vector.shape_cast %98 : vector<1x2x128xf32> to vector<2x128xf32>
    %100 = vector.shape_cast %97 : vector<2x128xf32> to vector<1x2x128xf32>
    tpu.vector_store %arg3[%c4, %c0_27, %c0_28], %100 {strides = array<i32>} : memref<8x2x128xf32, #tpu.memory_space<vmem>>, vector<1x2x128xf32>,
    %101 = vector.extract_strided_slice %6 {offsets = [0, 5], sizes = [2, 1], strides = [1, 1]} : vector<2x8xf32> to vector<2x1xf32>
    %102 = vector.broadcast %101 : vector<2x1xf32> to vector<2x128xf32>
    %103 = vector.broadcast %2 : vector<1x128xf32> to vector<2x128xf32>
    %104 = arith.mulf %102, %103 : vector<2x128xf32>
    %105 = vector.broadcast %4 : vector<1x128xf32> to vector<2x128xf32>
    %106 = arith.addf %104, %105 : vector<2x128xf32>
    %107 = vector.extract_strided_slice %7 {offsets = [0, 4], sizes = [2, 1], strides = [1, 1]} : vector<2x8xf32> to vector<2x1xf32>
    %108 = vector.broadcast %107 : vector<2x1xf32> to vector<2x128xf32>
    %109 = vector.broadcast %3 : vector<1x128xf32> to vector<2x128xf32>
    %110 = arith.mulf %108, %109 : vector<2x128xf32>
    %111 = arith.addf %106, %110 : vector<2x128xf32>
    %cst_29 = arith.constant dense<0.000000e+00> : vector<2x128xf32>
    %112 = tpu.matmul %94, %0, %cst_29 {dimension_numbers = #tpu.dot_dimension_numbers<[1], [0], [0], [1], [0, 0, 1, 1], [], []>} : vector<2x128xf32>, vector<128x128xf32>, vector<2x128xf32> -> vector<2x128xf32>
    %113 = arith.addf %111, %112 : vector<2x128xf32>
    %114 = math.tanh %113 : vector<2x128xf32>
    %cst_30 = arith.constant dense<0.000000e+00> : vector<2x128xf32>
    %115 = tpu.matmul %114, %1, %cst_30 {dimension_numbers = #tpu.dot_dimension_numbers<[1], [0], [0], [1], [0, 0, 1, 1], [], []>} : vector<2x128xf32>, vector<128x128xf32>, vector<2x128xf32> -> vector<2x128xf32>
    %116 = vector.broadcast %5 : vector<1x128xf32> to vector<2x128xf32>
    %117 = arith.addf %115, %116 : vector<2x128xf32>
    %c5 = arith.constant 5 : index
    %c0_31 = arith.constant 0 : index
    %c0_32 = arith.constant 0 : index
    %118 = vector.load %arg3[%c5, %c0_31, %c0_32] : memref<8x2x128xf32, #tpu.memory_space<vmem>>, vector<1x2x128xf32>
    %119 = vector.shape_cast %118 : vector<1x2x128xf32> to vector<2x128xf32>
    %120 = vector.shape_cast %117 : vector<2x128xf32> to vector<1x2x128xf32>
    tpu.vector_store %arg3[%c5, %c0_31, %c0_32], %120 {strides = array<i32>} : memref<8x2x128xf32, #tpu.memory_space<vmem>>, vector<1x2x128xf32>,
    %121 = vector.extract_strided_slice %6 {offsets = [0, 6], sizes = [2, 1], strides = [1, 1]} : vector<2x8xf32> to vector<2x1xf32>
    %122 = vector.broadcast %121 : vector<2x1xf32> to vector<2x128xf32>
    %123 = vector.broadcast %2 : vector<1x128xf32> to vector<2x128xf32>
    %124 = arith.mulf %122, %123 : vector<2x128xf32>
    %125 = vector.broadcast %4 : vector<1x128xf32> to vector<2x128xf32>
    %126 = arith.addf %124, %125 : vector<2x128xf32>
    %127 = vector.extract_strided_slice %7 {offsets = [0, 5], sizes = [2, 1], strides = [1, 1]} : vector<2x8xf32> to vector<2x1xf32>
    %128 = vector.broadcast %127 : vector<2x1xf32> to vector<2x128xf32>
    %129 = vector.broadcast %3 : vector<1x128xf32> to vector<2x128xf32>
    %130 = arith.mulf %128, %129 : vector<2x128xf32>
    %131 = arith.addf %126, %130 : vector<2x128xf32>
    %cst_33 = arith.constant dense<0.000000e+00> : vector<2x128xf32>
    %132 = tpu.matmul %114, %0, %cst_33 {dimension_numbers = #tpu.dot_dimension_numbers<[1], [0], [0], [1], [0, 0, 1, 1], [], []>} : vector<2x128xf32>, vector<128x128xf32>, vector<2x128xf32> -> vector<2x128xf32>
    %133 = arith.addf %131, %132 : vector<2x128xf32>
    %134 = math.tanh %133 : vector<2x128xf32>
    %cst_34 = arith.constant dense<0.000000e+00> : vector<2x128xf32>
    %135 = tpu.matmul %134, %1, %cst_34 {dimension_numbers = #tpu.dot_dimension_numbers<[1], [0], [0], [1], [0, 0, 1, 1], [], []>} : vector<2x128xf32>, vector<128x128xf32>, vector<2x128xf32> -> vector<2x128xf32>
    %136 = vector.broadcast %5 : vector<1x128xf32> to vector<2x128xf32>
    %137 = arith.addf %135, %136 : vector<2x128xf32>
    %c6 = arith.constant 6 : index
    %c0_35 = arith.constant 0 : index
    %c0_36 = arith.constant 0 : index
    %138 = vector.load %arg3[%c6, %c0_35, %c0_36] : memref<8x2x128xf32, #tpu.memory_space<vmem>>, vector<1x2x128xf32>
    %139 = vector.shape_cast %138 : vector<1x2x128xf32> to vector<2x128xf32>
    %140 = vector.shape_cast %137 : vector<2x128xf32> to vector<1x2x128xf32>
    tpu.vector_store %arg3[%c6, %c0_35, %c0_36], %140 {strides = array<i32>} : memref<8x2x128xf32, #tpu.memory_space<vmem>>, vector<1x2x128xf32>,
    %141 = vector.extract_strided_slice %6 {offsets = [0, 7], sizes = [2, 1], strides = [1, 1]} : vector<2x8xf32> to vector<2x1xf32>
    %142 = vector.broadcast %141 : vector<2x1xf32> to vector<2x128xf32>
    %143 = vector.broadcast %2 : vector<1x128xf32> to vector<2x128xf32>
    %144 = arith.mulf %142, %143 : vector<2x128xf32>
    %145 = vector.broadcast %4 : vector<1x128xf32> to vector<2x128xf32>
    %146 = arith.addf %144, %145 : vector<2x128xf32>
    %147 = vector.extract_strided_slice %7 {offsets = [0, 6], sizes = [2, 1], strides = [1, 1]} : vector<2x8xf32> to vector<2x1xf32>
    %148 = vector.broadcast %147 : vector<2x1xf32> to vector<2x128xf32>
    %149 = vector.broadcast %3 : vector<1x128xf32> to vector<2x128xf32>
    %150 = arith.mulf %148, %149 : vector<2x128xf32>
    %151 = arith.addf %146, %150 : vector<2x128xf32>
    %cst_37 = arith.constant dense<0.000000e+00> : vector<2x128xf32>
    %152 = tpu.matmul %134, %0, %cst_37 {dimension_numbers = #tpu.dot_dimension_numbers<[1], [0], [0], [1], [0, 0, 1, 1], [], []>} : vector<2x128xf32>, vector<128x128xf32>, vector<2x128xf32> -> vector<2x128xf32>
    %153 = arith.addf %151, %152 : vector<2x128xf32>
    %154 = math.tanh %153 : vector<2x128xf32>
    %cst_38 = arith.constant dense<0.000000e+00> : vector<2x128xf32>
    %155 = tpu.matmul %154, %1, %cst_38 {dimension_numbers = #tpu.dot_dimension_numbers<[1], [0], [0], [1], [0, 0, 1, 1], [], []>} : vector<2x128xf32>, vector<128x128xf32>, vector<2x128xf32> -> vector<2x128xf32>
    %156 = vector.broadcast %5 : vector<1x128xf32> to vector<2x128xf32>
    %157 = arith.addf %155, %156 : vector<2x128xf32>
    %c7 = arith.constant 7 : index
    %c0_39 = arith.constant 0 : index
    %c0_40 = arith.constant 0 : index
    %158 = vector.load %arg3[%c7, %c0_39, %c0_40] : memref<8x2x128xf32, #tpu.memory_space<vmem>>, vector<1x2x128xf32>
    %159 = vector.shape_cast %158 : vector<1x2x128xf32> to vector<2x128xf32>
    %160 = vector.shape_cast %157 : vector<2x128xf32> to vector<1x2x128xf32>
    tpu.vector_store %arg3[%c7, %c0_39, %c0_40], %160 {strides = array<i32>} : memref<8x2x128xf32, #tpu.memory_space<vmem>>, vector<1x2x128xf32>,
    return
  }
}

</mosaic_0001>

<llo_original>
// kernel: conditional_gaussian_rnn_forward.1
$region0: #{conditional_gaussian_rnn_forward.1}
  #allocation0 [shape = 'u32[]', space=smem, size = 0x4, offset = 0x4, fixed_abs, tag = 'smem constant byte address 0x4 - core index']
  #allocation1 [shape = 'u32[72,128]{1,0:T(1,128)}', space=vmem, size = 0x9000, scoped, tag = 'internal scratch']
  %s0 = inlined_call_operand.hbm [shape: f32[2,8], index: 0, kind: input, shape index: {}]
  %s1 = inlined_call_operand.hbm [shape: f32[2,8], index: 1, kind: input, shape index: {}]
  %s2 = inlined_call_operand.hbm [shape: f32[264,128], index: 2, kind: input, shape index: {}]
  %s3 = inlined_call_operand.vmem [shape: f32[8,2,128], index: 3, kind: output, shape index: {}]
  %s4 = sld [smem:[#allocation0]]
  $region34: #{conditional_gaussian_rnn_forward.1} parent=0
    _
  %s6 = ssub.s32 1, %s4
  %s7 = scalar_select 0, %s6, %s4
  $region1: #{conditional_gaussian_rnn_forward.1} parent=0
    #allocation2 [shape = 'u8[1024]{0}', space=vmem, size = 0x400, scoped, tag = 'input window, operand 0, single buffered']
    #allocation3 [shape = 's32[1]{0}', space=sflag, size = 0x4, scoped, tag = 'scoped memory for conditional_gaussian_rnn_forward.1']
    #allocation4 [shape = 'u8[1024]{0}', space=vmem, size = 0x400, scoped, tag = 'input window, operand 1, single buffered']
    #allocation5 [shape = 's32[1]{0}', space=sflag, size = 0x4, scoped, tag = 'scoped memory for conditional_gaussian_rnn_forward.1']
    #allocation6 [shape = 'u8[135168]{0}', space=vmem, size = 0x21000, scoped, tag = 'input window, operand 2, single buffered']
    %8 = vsyncpa [#allocation3], 0
    %9 = vsyncpa [#allocation5], 0
    // Predicated region
    $region2: #{conditional_gaussian_rnn_forward.1} parent=1 // pred_check
      _
    $region3: #{conditional_gaussian_rnn_forward.1} parent=1 // pred_check_branch
      %11 = sbr.rel (0) target = $region5
    $region4: #{conditional_gaussian_rnn_forward.1} parent=1 // pred_region
      %13 = vsyncadd [#allocation3], 0
      %s15 = sshll.u32 %s0, 4
      %s16 = int_to_ptr.hbm [resolvable:$true] %s15
      %s17 = sshll.u32 [#allocation2], 4
      %s18 = int_to_ptr.vmem [resolvable:$true] %s17
      %20 = dma.hbm_to_vmem [thread:$0]  %s16, 32, %s18, [#allocation3]
    $region5: #{conditional_gaussian_rnn_forward.1} parent=1 // pred_fallthru
      _
    // Predicated region
    $region6: #{conditional_gaussian_rnn_forward.1} parent=1 // pred_check
      _
    $region7: #{conditional_gaussian_rnn_forward.1} parent=1 // pred_check_branch
      %22 = sbr.rel (0) target = $region9
    $region8: #{conditional_gaussian_rnn_forward.1} parent=1 // pred_region
      %24 = vsyncadd [#allocation5], 0
      %s26 = sshll.u32 %s1, 4
      %s27 = int_to_ptr.hbm [resolvable:$true] %s26
      %s28 = sshll.u32 [#allocation4], 4
      %s29 = int_to_ptr.vmem [resolvable:$true] %s28
      %31 = dma.hbm_to_vmem [thread:$0]  %s27, 32, %s29, [#allocation5]
    $region9: #{conditional_gaussian_rnn_forward.1} parent=1 // pred_fallthru
      _
    // Predicated region
    $region10: #{conditional_gaussian_rnn_forward.1} parent=1 // pred_check
      _
    $region11: #{conditional_gaussian_rnn_forward.1} parent=1 // pred_check_branch
      %33 = sbr.rel (0) target = $region13
    $region12: #{conditional_gaussian_rnn_forward.1} parent=1 // pred_region
      %35 = vsyncadd [#allocation5], 0
      %s36 = sshll.u32 %s2, 4
      %s37 = int_to_ptr.hbm [resolvable:$true] %s36
      %s38 = sshll.u32 [#allocation6], 4
      %s39 = int_to_ptr.vmem [resolvable:$true] %s38
      %44 = dma.hbm_to_vmem [thread:$0]  %s37, 4224, %s39, [#allocation5], 128, 128, 8
    $region13: #{conditional_gaussian_rnn_forward.1} parent=1 // pred_fallthru
      _
    // Predicated region
    $region14: #{conditional_gaussian_rnn_forward.1} parent=1 // pred_check
      _
    $region15: #{conditional_gaussian_rnn_forward.1} parent=1 // pred_check_branch
      %46 = sbr.rel (0) target = $region17
    $region16: #{conditional_gaussian_rnn_forward.1} parent=1 // pred_region
      %48 = dma.done [#allocation3], 32
    $region17: #{conditional_gaussian_rnn_forward.1} parent=1 // pred_fallthru
      _
    // Predicated region
    $region18: #{conditional_gaussian_rnn_forward.1} parent=1 // pred_check
      _
    $region19: #{conditional_gaussian_rnn_forward.1} parent=1 // pred_check_branch
      %50 = sbr.rel (0) target = $region21
    $region20: #{conditional_gaussian_rnn_forward.1} parent=1 // pred_region
      %52 = dma.done [#allocation5], 32
    $region21: #{conditional_gaussian_rnn_forward.1} parent=1 // pred_fallthru
      _
    // Predicated region
    $region22: #{conditional_gaussian_rnn_forward.1} parent=1 // pred_check
      _
    $region23: #{conditional_gaussian_rnn_forward.1} parent=1 // pred_check_branch
      %54 = sbr.rel (0) target = $region25
    $region24: #{conditional_gaussian_rnn_forward.1} parent=1 // pred_region
      %56 = dma.done [#allocation5], 4224
    $region25: #{conditional_gaussian_rnn_forward.1} parent=1 // pred_fallthru
      _
    %v57 = vld [vmem:[#allocation6] sm:$0xff]
    %v58 = vld [vmem:[#allocation6 + $0x8] sm:$0xff]
    %v59 = vld [vmem:[#allocation6 + $0x10] sm:$0xff]
    %v60 = vld [vmem:[#allocation6 + $0x18] sm:$0xff]
    %v61 = vld [vmem:[#allocation6 + $0x20] sm:$0xff]
    %v62 = vld [vmem:[#allocation6 + $0x28] sm:$0xff]
    %v63 = vld [vmem:[#allocation6 + $0x30] sm:$0xff]
    %v64 = vld [vmem:[#allocation6 + $0x38] sm:$0xff]
    %v65 = vld [vmem:[#allocation6 + $0x40] sm:$0xff]
    %v66 = vld [vmem:[#allocation6 + $0x48] sm:$0xff]
    %v67 = vld [vmem:[#allocation6 + $0x50] sm:$0xff]
    %v68 = vld [vmem:[#allocation6 + $0x58] sm:$0xff]
    %v69 = vld [vmem:[#allocation6 + $0x60] sm:$0xff]
    %v70 = vld [vmem:[#allocation6 + $0x68] sm:$0xff]
    %v71 = vld [vmem:[#allocation6 + $0x70] sm:$0xff]
    %v72 = vld [vmem:[#allocation6 + $0x78] sm:$0xff]
    %v73 = vld [vmem:[#allocation6 + $0x80] sm:$0xff]
    %v74 = vld [vmem:[#allocation6 + $0x88] sm:$0xff]
    %v75 = vld [vmem:[#allocation6 + $0x90] sm:$0xff]
    %v76 = vld [vmem:[#allocation6 + $0x98] sm:$0xff]
    %v77 = vld [vmem:[#allocation6 + $0xa0] sm:$0xff]
    %v78 = vld [vmem:[#allocation6 + $0xa8] sm:$0xff]
    %v79 = vld [vmem:[#allocation6 + $0xb0] sm:$0xff]
    %v80 = vld [vmem:[#allocation6 + $0xb8] sm:$0xff]
    %v81 = vld [vmem:[#allocation6 + $0xc0] sm:$0xff]
    %v82 = vld [vmem:[#allocation6 + $0xc8] sm:$0xff]
    %v83 = vld [vmem:[#allocation6 + $0xd0] sm:$0xff]
    %v84 = vld [vmem:[#allocation6 + $0xd8] sm:$0xff]
    %v85 = vld [vmem:[#allocation6 + $0xe0] sm:$0xff]
    %v86 = vld [vmem:[#allocation6 + $0xe8] sm:$0xff]
    %v87 = vld [vmem:[#allocation6 + $0xf0] sm:$0xff]
    %v88 = vld [vmem:[#allocation6 + $0xf8] sm:$0xff]
    %v89 = vld [vmem:[#allocation6 + $0x100] sm:$0x1]
    %v90 = vld [vmem:[#allocation6 + $0x101] sm:$0x1]
    %v91 = vld [vmem:[#allocation6 + $0x102] sm:$0x1]
    %v92 = vld [vmem:[#allocation6 + $0x103] sm:$0x1]
    %v93 = vld [vmem:[#allocation2] sm:$0x3]
    %v94 = vld [vmem:[#allocation4] sm:$0x3]
    %96 = vset.pattern.permute.xlu0 0
    %97 = vperm.xlu0 %96, %v93
    %v98 = vpop.permute.xlu0 %97
    %v100 = vperm.slane %v89, 0
    %v101 = vmul.f32 %v98, %v100
    %v102 = vperm.slane %v91, 0
    %v103 = vadd.f32 %v101, %v102
    %v104 = vtanh.pop %v103
    %v105 = vperm.slane %v92, 0
    %106 = vmatpush.msra.mxu0 %v88
    %107 = vmatpush.msra.mxu0 %v87
    %108 = vmatpush.msra.mxu0 %v86
    %109 = vmatpush.msra.mxu0 %v85
    %110 = vmatpush.msra.mxu0 %v84
    %111 = vmatpush.msra.mxu0 %v83
    %112 = vmatpush.msra.mxu0 %v82
    %113 = vmatpush.msra.mxu0 %v81
    %114 = vmatpush.msra.mxu0 %v80
    %115 = vmatpush.msra.mxu0 %v79
    %116 = vmatpush.msra.mxu0 %v78
    %117 = vmatpush.msra.mxu0 %v77
    %118 = vmatpush.msra.mxu0 %v76
    %119 = vmatpush.msra.mxu0 %v75
    %120 = vmatpush.msra.mxu0 %v74
    %121 = vmatpush.msra.mxu0 %v73
    %122 = vmatmul.f32.gmra.mxu0 %v104
    %v123 = vpop.f32.mrf.mxu0
    %v124 = vadd.f32 %v105, %v123
    %125 = vdwg.mxu0
    %126 = vst [vmem:[%s3] sm:$0x3] %v124
    %127 = vset.pattern.permute.xlu0 1
    %128 = vperm.xlu0 %127, %v93
    %v129 = vpop.permute.xlu0 %128
    %v131 = vmul.f32 %v129, %v100
    %v132 = vadd.f32 %v131, %v102
    %134 = vset.pattern.permute.xlu0 0
    %135 = vperm.xlu0 %134, %v94
    %v136 = vpop.permute.xlu0 %135
    %v138 = vperm.slane %v90, 0
    %v139 = vmul.f32 %v136, %v138
    %v140 = vadd.f32 %v132, %v139
    %141 = vmatpush.msra.mxu0 %v72
    %142 = vmatpush.msra.mxu0 %v71
    %143 = vmatpush.msra.mxu0 %v70
    %144 = vmatpush.msra.mxu0 %v69
    %145 = vmatpush.msra.mxu0 %v68
    %146 = vmatpush.msra.mxu0 %v67
    %147 = vmatpush.msra.mxu0 %v66
    %148 = vmatpush.msra.mxu0 %v65
    %149 = vmatpush.msra.mxu0 %v64
    %150 = vmatpush.msra.mxu0 %v63
    %151 = vmatpush.msra.mxu0 %v62
    %152 = vmatpush.msra.mxu0 %v61
    %153 = vmatpush.msra.mxu0 %v60
    %154 = vmatpush.msra.mxu0 %v59
    %155 = vmatpush.msra.mxu0 %v58
    %156 = vmatpush.msra.mxu0 %v57
    %157 = vmatmul.f32.gmra.mxu0 %v104
    %v158 = vpop.f32.mrf.mxu0
    %v159 = vadd.f32 0.0, %v158
    %160 = vdwg.mxu0
    %v161 = vadd.f32 %v140, %v159
    %v162 = vtanh.pop %v161
    %163 = vmatpush.msra.mxu0 %v88
    %164 = vmatpush.msra.mxu0 %v87
    %165 = vmatpush.msra.mxu0 %v86
    %166 = vmatpush.msra.mxu0 %v85
    %167 = vmatpush.msra.mxu0 %v84
    %168 = vmatpush.msra.mxu0 %v83
    %169 = vmatpush.msra.mxu0 %v82
    %170 = vmatpush.msra.mxu0 %v81
    %171 = vmatpush.msra.mxu0 %v80
    %172 = vmatpush.msra.mxu0 %v79
    %173 = vmatpush.msra.mxu0 %v78
    %174 = vmatpush.msra.mxu0 %v77
    %175 = vmatpush.msra.mxu0 %v76
    %176 = vmatpush.msra.mxu0 %v75
    %177 = vmatpush.msra.mxu0 %v74
    %178 = vmatpush.msra.mxu0 %v73
    %179 = vmatmul.f32.gmra.mxu0 %v162
    %v180 = vpop.f32.mrf.mxu0
    %v181 = vadd.f32 %v105, %v180
    %182 = vdwg.mxu0
    %s183 = scalar_lea.vmem %s3, 2
    %184 = vst [vmem:[%s183] sm:$0x3] %v181
    %185 = vset.pattern.permute.xlu0 2
    %186 = vperm.xlu0 %185, %v93
    %v187 = vpop.permute.xlu0 %186
    %v189 = vmul.f32 %v187, %v100
    %v190 = vadd.f32 %v189, %v102
    %191 = vset.pattern.permute.xlu0 1
    %192 = vperm.xlu0 %191, %v94
    %v193 = vpop.permute.xlu0 %192
    %v195 = vmul.f32 %v193, %v138
    %v196 = vadd.f32 %v190, %v195
    %197 = vmatpush.msra.mxu0 %v72
    %198 = vmatpush.msra.mxu0 %v71
    %199 = vmatpush.msra.mxu0 %v70
    %200 = vmatpush.msra.mxu0 %v69
    %201 = vmatpush.msra.mxu0 %v68
    %202 = vmatpush.msra.mxu0 %v67
    %203 = vmatpush.msra.mxu0 %v66
    %204 = vmatpush.msra.mxu0 %v65
    %205 = vmatpush.msra.mxu0 %v64
    %206 = vmatpush.msra.mxu0 %v63
    %207 = vmatpush.msra.mxu0 %v62
    %208 = vmatpush.msra.mxu0 %v61
    %209 = vmatpush.msra.mxu0 %v60
    %210 = vmatpush.msra.mxu0 %v59
    %211 = vmatpush.msra.mxu0 %v58
    %212 = vmatpush.msra.mxu0 %v57
    %213 = vmatmul.f32.gmra.mxu0 %v162
    %v214 = vpop.f32.mrf.mxu0
    %v215 = vadd.f32 0.0, %v214
    %216 = vdwg.mxu0
    %v217 = vadd.f32 %v196, %v215
    %v218 = vtanh.pop %v217
    %219 = vmatpush.msra.mxu0 %v88
    %220 = vmatpush.msra.mxu0 %v87
    %221 = vmatpush.msra.mxu0 %v86
    %222 = vmatpush.msra.mxu0 %v85
    %223 = vmatpush.msra.mxu0 %v84
    %224 = vmatpush.msra.mxu0 %v83
    %225 = vmatpush.msra.mxu0 %v82
    %226 = vmatpush.msra.mxu0 %v81
    %227 = vmatpush.msra.mxu0 %v80
    %228 = vmatpush.msra.mxu0 %v79
    %229 = vmatpush.msra.mxu0 %v78
    %230 = vmatpush.msra.mxu0 %v77
    %231 = vmatpush.msra.mxu0 %v76
    %232 = vmatpush.msra.mxu0 %v75
    %233 = vmatpush.msra.mxu0 %v74
    %234 = vmatpush.msra.mxu0 %v73
    %235 = vmatmul.f32.gmra.mxu0 %v218
    %v236 = vpop.f32.mrf.mxu0
    %v237 = vadd.f32 %v105, %v236
    %238 = vdwg.mxu0
    %s239 = scalar_lea.vmem %s3, 4
    %240 = vst [vmem:[%s239] sm:$0x3] %v237
    %241 = vset.pattern.permute.xlu0 3
    %242 = vperm.xlu0 %241, %v93
    %v243 = vpop.permute.xlu0 %242
    %v245 = vmul.f32 %v243, %v100
    %v246 = vadd.f32 %v245, %v102
    %247 = vset.pattern.permute.xlu0 2
    %248 = vperm.xlu0 %247, %v94
    %v249 = vpop.permute.xlu0 %248
    %v251 = vmul.f32 %v249, %v138
    %v252 = vadd.f32 %v246, %v251
    %253 = vmatpush.msra.mxu0 %v72
    %254 = vmatpush.msra.mxu0 %v71
    %255 = vmatpush.msra.mxu0 %v70
    %256 = vmatpush.msra.mxu0 %v69
    %257 = vmatpush.msra.mxu0 %v68
    %258 = vmatpush.msra.mxu0 %v67
    %259 = vmatpush.msra.mxu0 %v66
    %260 = vmatpush.msra.mxu0 %v65
    %261 = vmatpush.msra.mxu0 %v64
    %262 = vmatpush.msra.mxu0 %v63
    %263 = vmatpush.msra.mxu0 %v62
    %264 = vmatpush.msra.mxu0 %v61
    %265 = vmatpush.msra.mxu0 %v60
    %266 = vmatpush.msra.mxu0 %v59
    %267 = vmatpush.msra.mxu0 %v58
    %268 = vmatpush.msra.mxu0 %v57
    %269 = vmatmul.f32.gmra.mxu0 %v218
    %v270 = vpop.f32.mrf.mxu0
    %v271 = vadd.f32 0.0, %v270
    %272 = vdwg.mxu0
    %v273 = vadd.f32 %v252, %v271
    %v274 = vtanh.pop %v273
    %275 = vmatpush.msra.mxu0 %v88
    %276 = vmatpush.msra.mxu0 %v87
    %277 = vmatpush.msra.mxu0 %v86
    %278 = vmatpush.msra.mxu0 %v85
    %279 = vmatpush.msra.mxu0 %v84
    %280 = vmatpush.msra.mxu0 %v83
    %281 = vmatpush.msra.mxu0 %v82
    %282 = vmatpush.msra.mxu0 %v81
    %283 = vmatpush.msra.mxu0 %v80
    %284 = vmatpush.msra.mxu0 %v79
    %285 = vmatpush.msra.mxu0 %v78
    %286 = vmatpush.msra.mxu0 %v77
    %287 = vmatpush.msra.mxu0 %v76
    %288 = vmatpush.msra.mxu0 %v75
    %289 = vmatpush.msra.mxu0 %v74
    %290 = vmatpush.msra.mxu0 %v73
    %291 = vmatmul.f32.gmra.mxu0 %v274
    %v292 = vpop.f32.mrf.mxu0
    %v293 = vadd.f32 %v105, %v292
    %294 = vdwg.mxu0
    %s295 = scalar_lea.vmem %s3, 6
    %296 = vst [vmem:[%s295] sm:$0x3] %v293
    %297 = vset.pattern.permute.xlu0 4
    %298 = vperm.xlu0 %297, %v93
    %v299 = vpop.permute.xlu0 %298
    %v301 = vmul.f32 %v299, %v100
    %v302 = vadd.f32 %v301, %v102
    %303 = vset.pattern.permute.xlu0 3
    %304 = vperm.xlu0 %303, %v94
    %v305 = vpop.permute.xlu0 %304
    %v307 = vmul.f32 %v305, %v138
    %v308 = vadd.f32 %v302, %v307
    %309 = vmatpush.msra.mxu0 %v72
    %310 = vmatpush.msra.mxu0 %v71
    %311 = vmatpush.msra.mxu0 %v70
    %312 = vmatpush.msra.mxu0 %v69
    %313 = vmatpush.msra.mxu0 %v68
    %314 = vmatpush.msra.mxu0 %v67
    %315 = vmatpush.msra.mxu0 %v66
    %316 = vmatpush.msra.mxu0 %v65
    %317 = vmatpush.msra.mxu0 %v64
    %318 = vmatpush.msra.mxu0 %v63
    %319 = vmatpush.msra.mxu0 %v62
    %320 = vmatpush.msra.mxu0 %v61
    %321 = vmatpush.msra.mxu0 %v60
    %322 = vmatpush.msra.mxu0 %v59
    %323 = vmatpush.msra.mxu0 %v58
    %324 = vmatpush.msra.mxu0 %v57
    %325 = vmatmul.f32.gmra.mxu0 %v274
    %v326 = vpop.f32.mrf.mxu0
    %v327 = vadd.f32 0.0, %v326
    %328 = vdwg.mxu0
    %v329 = vadd.f32 %v308, %v327
    %v330 = vtanh.pop %v329
    %331 = vmatpush.msra.mxu0 %v88
    %332 = vmatpush.msra.mxu0 %v87
    %333 = vmatpush.msra.mxu0 %v86
    %334 = vmatpush.msra.mxu0 %v85
    %335 = vmatpush.msra.mxu0 %v84
    %336 = vmatpush.msra.mxu0 %v83
    %337 = vmatpush.msra.mxu0 %v82
    %338 = vmatpush.msra.mxu0 %v81
    %339 = vmatpush.msra.mxu0 %v80
    %340 = vmatpush.msra.mxu0 %v79
    %341 = vmatpush.msra.mxu0 %v78
    %342 = vmatpush.msra.mxu0 %v77
    %343 = vmatpush.msra.mxu0 %v76
    %344 = vmatpush.msra.mxu0 %v75
    %345 = vmatpush.msra.mxu0 %v74
    %346 = vmatpush.msra.mxu0 %v73
    %347 = vmatmul.f32.gmra.mxu0 %v330
    %v348 = vpop.f32.mrf.mxu0
    %v349 = vadd.f32 %v105, %v348
    %350 = vdwg.mxu0
    %s351 = scalar_lea.vmem %s3, 8
    %352 = vst [vmem:[%s351] sm:$0x3] %v349
    %353 = vset.pattern.permute.xlu0 5
    %354 = vperm.xlu0 %353, %v93
    %v355 = vpop.permute.xlu0 %354
    %v357 = vmul.f32 %v355, %v100
    %v358 = vadd.f32 %v357, %v102
    %359 = vset.pattern.permute.xlu0 4
    %360 = vperm.xlu0 %359, %v94
    %v361 = vpop.permute.xlu0 %360
    %v363 = vmul.f32 %v361, %v138
    %v364 = vadd.f32 %v358, %v363
    %365 = vmatpush.msra.mxu0 %v72
    %366 = vmatpush.msra.mxu0 %v71
    %367 = vmatpush.msra.mxu0 %v70
    %368 = vmatpush.msra.mxu0 %v69
    %369 = vmatpush.msra.mxu0 %v68
    %370 = vmatpush.msra.mxu0 %v67
    %371 = vmatpush.msra.mxu0 %v66
    %372 = vmatpush.msra.mxu0 %v65
    %373 = vmatpush.msra.mxu0 %v64
    %374 = vmatpush.msra.mxu0 %v63
    %375 = vmatpush.msra.mxu0 %v62
    %376 = vmatpush.msra.mxu0 %v61
    %377 = vmatpush.msra.mxu0 %v60
    %378 = vmatpush.msra.mxu0 %v59
    %379 = vmatpush.msra.mxu0 %v58
    %380 = vmatpush.msra.mxu0 %v57
    %381 = vmatmul.f32.gmra.mxu0 %v330
    %v382 = vpop.f32.mrf.mxu0
    %v383 = vadd.f32 0.0, %v382
    %384 = vdwg.mxu0
    %v385 = vadd.f32 %v364, %v383
    %v386 = vtanh.pop %v385
    %387 = vmatpush.msra.mxu0 %v88
    %388 = vmatpush.msra.mxu0 %v87
    %389 = vmatpush.msra.mxu0 %v86
    %390 = vmatpush.msra.mxu0 %v85
    %391 = vmatpush.msra.mxu0 %v84
    %392 = vmatpush.msra.mxu0 %v83
    %393 = vmatpush.msra.mxu0 %v82
    %394 = vmatpush.msra.mxu0 %v81
    %395 = vmatpush.msra.mxu0 %v80
    %396 = vmatpush.msra.mxu0 %v79
    %397 = vmatpush.msra.mxu0 %v78
    %398 = vmatpush.msra.mxu0 %v77
    %399 = vmatpush.msra.mxu0 %v76
    %400 = vmatpush.msra.mxu0 %v75
    %401 = vmatpush.msra.mxu0 %v74
    %402 = vmatpush.msra.mxu0 %v73
    %403 = vmatmul.f32.gmra.mxu0 %v386
    %v404 = vpop.f32.mrf.mxu0
    %v405 = vadd.f32 %v105, %v404
    %406 = vdwg.mxu0
    %s407 = scalar_lea.vmem %s3, 10
    %408 = vst [vmem:[%s407] sm:$0x3] %v405
    %409 = vset.pattern.permute.xlu0 6
    %410 = vperm.xlu0 %409, %v93
    %v411 = vpop.permute.xlu0 %410
    %v413 = vmul.f32 %v411, %v100
    %v414 = vadd.f32 %v413, %v102
    %415 = vset.pattern.permute.xlu0 5
    %416 = vperm.xlu0 %415, %v94
    %v417 = vpop.permute.xlu0 %416
    %v419 = vmul.f32 %v417, %v138
    %v420 = vadd.f32 %v414, %v419
    %421 = vmatpush.msra.mxu0 %v72
    %422 = vmatpush.msra.mxu0 %v71
    %423 = vmatpush.msra.mxu0 %v70
    %424 = vmatpush.msra.mxu0 %v69
    %425 = vmatpush.msra.mxu0 %v68
    %426 = vmatpush.msra.mxu0 %v67
    %427 = vmatpush.msra.mxu0 %v66
    %428 = vmatpush.msra.mxu0 %v65
    %429 = vmatpush.msra.mxu0 %v64
    %430 = vmatpush.msra.mxu0 %v63
    %431 = vmatpush.msra.mxu0 %v62
    %432 = vmatpush.msra.mxu0 %v61
    %433 = vmatpush.msra.mxu0 %v60
    %434 = vmatpush.msra.mxu0 %v59
    %435 = vmatpush.msra.mxu0 %v58
    %436 = vmatpush.msra.mxu0 %v57
    %437 = vmatmul.f32.gmra.mxu0 %v386
    %v438 = vpop.f32.mrf.mxu0
    %v439 = vadd.f32 0.0, %v438
    %440 = vdwg.mxu0
    %v441 = vadd.f32 %v420, %v439
    %v442 = vtanh.pop %v441
    %443 = vmatpush.msra.mxu0 %v88
    %444 = vmatpush.msra.mxu0 %v87
    %445 = vmatpush.msra.mxu0 %v86
    %446 = vmatpush.msra.mxu0 %v85
    %447 = vmatpush.msra.mxu0 %v84
    %448 = vmatpush.msra.mxu0 %v83
    %449 = vmatpush.msra.mxu0 %v82
    %450 = vmatpush.msra.mxu0 %v81
    %451 = vmatpush.msra.mxu0 %v80
    %452 = vmatpush.msra.mxu0 %v79
    %453 = vmatpush.msra.mxu0 %v78
    %454 = vmatpush.msra.mxu0 %v77
    %455 = vmatpush.msra.mxu0 %v76
    %456 = vmatpush.msra.mxu0 %v75
    %457 = vmatpush.msra.mxu0 %v74
    %458 = vmatpush.msra.mxu0 %v73
    %459 = vmatmul.f32.gmra.mxu0 %v442
    %v460 = vpop.f32.mrf.mxu0
    %v461 = vadd.f32 %v105, %v460
    %462 = vdwg.mxu0
    %s463 = scalar_lea.vmem %s3, 12
    %464 = vst [vmem:[%s463] sm:$0x3] %v461
    %465 = vset.pattern.permute.xlu0 7
    %466 = vperm.xlu0 %465, %v93
    %v467 = vpop.permute.xlu0 %466
    %v469 = vmul.f32 %v467, %v100
    %v470 = vadd.f32 %v469, %v102
    %471 = vset.pattern.permute.xlu0 6
    %472 = vperm.xlu0 %471, %v94
    %v473 = vpop.permute.xlu0 %472
    %v475 = vmul.f32 %v473, %v138
    %v476 = vadd.f32 %v470, %v475
    %477 = vmatpush.msra.mxu0 %v72
    %478 = vmatpush.msra.mxu0 %v71
    %479 = vmatpush.msra.mxu0 %v70
    %480 = vmatpush.msra.mxu0 %v69
    %481 = vmatpush.msra.mxu0 %v68
    %482 = vmatpush.msra.mxu0 %v67
    %483 = vmatpush.msra.mxu0 %v66
    %484 = vmatpush.msra.mxu0 %v65
    %485 = vmatpush.msra.mxu0 %v64
    %486 = vmatpush.msra.mxu0 %v63
    %487 = vmatpush.msra.mxu0 %v62
    %488 = vmatpush.msra.mxu0 %v61
    %489 = vmatpush.msra.mxu0 %v60
    %490 = vmatpush.msra.mxu0 %v59
    %491 = vmatpush.msra.mxu0 %v58
    %492 = vmatpush.msra.mxu0 %v57
    %493 = vmatmul.f32.gmra.mxu0 %v442
    %v494 = vpop.f32.mrf.mxu0
    %v495 = vadd.f32 0.0, %v494
    %496 = vdwg.mxu0
    %v497 = vadd.f32 %v476, %v495
    %v498 = vtanh.pop %v497
    %499 = vmatpush.msra.mxu0 %v88
    %500 = vmatpush.msra.mxu0 %v87
    %501 = vmatpush.msra.mxu0 %v86
    %502 = vmatpush.msra.mxu0 %v85
    %503 = vmatpush.msra.mxu0 %v84
    %504 = vmatpush.msra.mxu0 %v83
    %505 = vmatpush.msra.mxu0 %v82
    %506 = vmatpush.msra.mxu0 %v81
    %507 = vmatpush.msra.mxu0 %v80
    %508 = vmatpush.msra.mxu0 %v79
    %509 = vmatpush.msra.mxu0 %v78
    %510 = vmatpush.msra.mxu0 %v77
    %511 = vmatpush.msra.mxu0 %v76
    %512 = vmatpush.msra.mxu0 %v75
    %513 = vmatpush.msra.mxu0 %v74
    %514 = vmatpush.msra.mxu0 %v73
    %515 = vmatmul.f32.gmra.mxu0 %v498
    %v516 = vpop.f32.mrf.mxu0
    %v517 = vadd.f32 %v105, %v516
    %518 = vdwg.mxu0
    %s519 = scalar_lea.vmem %s3, 14
    %520 = vst [vmem:[%s519] sm:$0x3] %v517
    // Predicated region
    $region26: #{conditional_gaussian_rnn_forward.1} parent=1 // pred_check
      _
    $region27: #{conditional_gaussian_rnn_forward.1} parent=1 // pred_check_branch
      %522 = sbr.rel (0) target = $region29
    $region28: #{conditional_gaussian_rnn_forward.1} parent=1 // pred_region
      _
    $region29: #{conditional_gaussian_rnn_forward.1} parent=1 // pred_fallthru
      _
    // Predicated region
    $region30: #{conditional_gaussian_rnn_forward.1} parent=1 // pred_check
      _
    $region31: #{conditional_gaussian_rnn_forward.1} parent=1 // pred_check_branch
      %524 = sbr.rel (0) target = $region33
    $region32: #{conditional_gaussian_rnn_forward.1} parent=1 // pred_region
      _
    $region33: #{conditional_gaussian_rnn_forward.1} parent=1 // pred_fallthru
      _
    %525 = vsyncpa [#allocation3], 1
    %526 = vsyncpa [#allocation5], 1

</llo_original>
